<compile_context>
chip_gen: v6e
topology: v6e:2x2x1
jax: 0.10.0
libtpu: 0.0.40
codegen_flags: <defaults>
</compile_context>

<pallas_src>
import functools

import jax
import jax.numpy as jnp
from jax.experimental import pallas as pl
from jax.experimental.pallas import tpu as pltpu


def _round_up(x: int, m: int) -> int:
    return ((x + m - 1) // m) * m


def _linear_relu_kernel(x_ref, w_ref, b_ref, o_ref, acc_ref):
    k = pl.program_id(2)

    @pl.when(k == 0)
    def _init():
        acc_ref[...] = jnp.zeros_like(acc_ref)

    # MXU partial product, accumulated in f32 VMEM scratch.
    acc_ref[...] += jnp.dot(
        x_ref[...], w_ref[...], preferred_element_type=jnp.float32
    )

    @pl.when(k == pl.num_programs(2) - 1)
    def _finalize():
        # Bias add + ReLU only once per output tile (not per K step).
        out = jnp.maximum(acc_ref[...] + b_ref[...], 0.0)
        o_ref[...] = out.astype(o_ref.dtype)


@functools.partial(jax.jit, static_argnames=("tm", "tn", "tk"))
def one_layer_projection_head(x, w, b, *, tm=256, tn=512, tk=512):
    """ReLU(x @ w + b) as a tiled, pipelined Pallas TPU kernel.

    x: (B, in_dim) float32
    w: (in_dim, out_dim) float32   (transpose of torch's nn.Linear weight)
    b: (out_dim,) float32
    returns: (B, out_dim) float32
    """
    B, K = x.shape
    Kw, N = w.shape
    assert Kw == K and b.shape == (N,)

    # Clamp tiles to (padded) problem size; keep TPU layout granularity:
    # tm multiple of 8 (sublanes), tn/tk multiples of 128 (lanes).
    tm = min(tm, _round_up(B, 8))
    tn = min(tn, _round_up(N, 128))
    tk = min(tk, _round_up(K, 128))

    Mp = _round_up(B, tm)
    Np = _round_up(N, tn)
    Kp = _round_up(K, tk)

    # Zero-pad so every block is full and stores stay lane-dense (unmasked vst).
    xp = jnp.pad(x, ((0, Mp - B), (0, Kp - K))) if (Mp != B or Kp != K) else x
    wp = jnp.pad(w, ((0, Kp - K), (0, Np - N))) if (Kp != K or Np != N) else w
    bp = jnp.pad(b, (0, Np - N)) if Np != N else b
    b2 = bp.reshape(1, Np)

    grid = (Mp // tm, Np // tn, Kp // tk)

    # TODO(synk): optionally cast x/w to bf16 (keep f32 accumulator) for 2x MXU
    # throughput when the surrounding model tolerates it.
    cost = pl.CostEstimate(
        flops=2 * B * K * N,
        transcendentals=0,
        bytes_accessed=4 * (B * K + K * N + N + B * N),
    )

    out = pl.pallas_call(
        _linear_relu_kernel,
        out_shape=jax.ShapeDtypeStruct((Mp, Np), x.dtype),
        grid_spec=pltpu.PrefetchScalarGridSpec(
            num_scalar_prefetch=0,
            grid=grid,
            in_specs=[
                pl.BlockSpec((tm, tk), lambda i, j, k: (i, k)),   # x tile
                pl.BlockSpec((tk, tn), lambda i, j, k: (k, j)),   # w tile
                pl.BlockSpec((1, tn), lambda i, j, k: (0, j)),    # bias tile
            ],
            out_specs=pl.BlockSpec((tm, tn), lambda i, j, k: (i, j)),
            scratch_shapes=[pltpu.VMEM((tm, tn), jnp.float32)],
        ),
        compiler_params=pltpu.CompilerParams(
            dimension_semantics=("parallel", "parallel", "arbitrary"),
        ),
        cost_estimate=cost,
    )(xp, wp, b2)

    if Mp != B or Np != N:
        out = out[:B, :N]
    return out


def init_params(key, in_dim, out_dim):
    """Deterministic init mimicking PyTorch nn.Linear default (uniform)."""
    kw, kb = jax.random.split(key)
    bound = 1.0 / jnp.sqrt(in_dim)
    # PyTorch weight is (out_dim, in_dim); we store its transpose (in_dim, out_dim).
    w = jax.random.uniform(kw, (in_dim, out_dim), jnp.float32, -bound, bound)
    b = jax.random.uniform(kb, (out_dim,), jnp.float32, -bound, bound)
    return w, b


if __name__ == "__main__":
    key = jax.random.PRNGKey(0)
    k_x, k_p = jax.random.split(key)

    batch, in_dim, out_dim = 8, 32, 256
    x = jax.random.normal(k_x, (batch, in_dim), jnp.float32)
    w, b = init_params(k_p, in_dim, out_dim)

    out = one_layer_projection_head(x, w, b)
    jax.block_until_ready(out)

    # reference check (plain JAX)
    ref = jnp.maximum(x @ w + b, 0.0)
    assert out.shape == (batch, out_dim)
    assert jnp.allclose(out, ref, atol=1e-5, rtol=1e-5)

    print("KERNEL_OK")
</pallas_src>

<mosaic_0001>
module attributes {stable_mosaic.version = 11 : i64} {
  func.func @_linear_relu_kernel(%arg0: i32, %arg1: i32, %arg2: i32, %arg3: memref<8x128xf32, #tpu.memory_space<vmem>>, %arg4: memref<128x256xf32, #tpu.memory_space<vmem>>, %arg5: memref<1x256xf32, #tpu.memory_space<vmem>>, %arg6: memref<8x256xf32, #tpu.memory_space<vmem>>, %arg7: memref<8x256xf32, #tpu.memory_space<vmem>>) attributes {dimension_semantics = [#tpu.dimension_semantics<parallel>, #tpu.dimension_semantics<parallel>, #tpu.dimension_semantics<arbitrary>], iteration_bounds = array<i64: 1, 1, 1>, scalar_prefetch = 0 : i64, scratch_operands = 1 : i64, tpu.core_type = #tpu.core_type<tc>, window_params = [{transform_indices = @transform_0, window_bounds = array<i64: 8, 128>}, {transform_indices = @transform_1, window_bounds = array<i64: 128, 256>}, {transform_indices = @transform_2, window_bounds = array<i64: 1, 256>}, {transform_indices = @transform_3, window_bounds = array<i64: 8, 256>}]} {
    %c0_i32 = arith.constant 0 : i32
    %0 = arith.cmpi eq, %arg2, %c0_i32 : i32
    %1 = arith.extui %0 : i1 to i32
    %c0_i32_0 = arith.constant 0 : i32
    %2 = arith.cmpi ne, %1, %c0_i32_0 : i32
    scf.if %2 {
      %cst_10 = arith.constant 0.000000e+00 : f32
      %12 = vector.broadcast %cst_10 : f32 to vector<8x256xf32>
      %c0_11 = arith.constant 0 : index
      %c0_12 = arith.constant 0 : index
      %13 = vector.load %arg7[%c0_11, %c0_12] : memref<8x256xf32, #tpu.memory_space<vmem>>, vector<8x256xf32>
      tpu.vector_store %arg7[%c0_11, %c0_12], %12 {strides = array<i32>} : memref<8x256xf32, #tpu.memory_space<vmem>>, vector<8x256xf32>,
    } else {
    }
    %c0 = arith.constant 0 : index
    %c0_1 = arith.constant 0 : index
    %3 = vector.load %arg7[%c0, %c0_1] : memref<8x256xf32, #tpu.memory_space<vmem>>, vector<8x256xf32>
    %c0_2 = arith.constant 0 : index
    %c0_3 = arith.constant 0 : index
    %4 = vector.load %arg3[%c0_2, %c0_3] : memref<8x128xf32, #tpu.memory_space<vmem>>, vector<8x128xf32>
    %c0_4 = arith.constant 0 : index
    %c0_5 = arith.constant 0 : index
    %5 = vector.load %arg4[%c0_4, %c0_5] : memref<128x256xf32, #tpu.memory_space<vmem>>, vector<128x256xf32>
    %cst = arith.constant dense<0.000000e+00> : vector<8x256xf32>
    %6 = tpu.matmul %4, %5, %cst {dimension_numbers = #tpu.dot_dimension_numbers<[1], [0], [0], [1], [0, 0, 1, 1], [], []>} : vector<8x128xf32>, vector<128x256xf32>, vector<8x256xf32> -> vector<8x256xf32>
    %7 = arith.addf %3, %6 : vector<8x256xf32>
    %c0_6 = arith.constant 0 : index
    %c0_7 = arith.constant 0 : index
    %8 = vector.load %arg7[%c0_6, %c0_7] : memref<8x256xf32, #tpu.memory_space<vmem>>, vector<8x256xf32>
    tpu.vector_store %arg7[%c0_6, %c0_7], %7 {strides = array<i32>} : memref<8x256xf32, #tpu.memory_space<vmem>>, vector<8x256xf32>,
    %c0_i32_8 = arith.constant 0 : i32
    %9 = arith.cmpi eq, %arg2, %c0_i32_8 : i32
    %10 = arith.extui %9 : i1 to i32
    %c0_i32_9 = arith.constant 0 : i32
    %11 = arith.cmpi ne, %10, %c0_i32_9 : i32
    scf.if %11 {
      %c0_10 = arith.constant 0 : index
      %c0_11 = arith.constant 0 : index
      %12 = vector.load %arg7[%c0_10, %c0_11] : memref<8x256xf32, #tpu.memory_space<vmem>>, vector<8x256xf32>
      %c0_12 = arith.constant 0 : index
      %c0_13 = arith.constant 0 : index
      %13 = vector.load %arg5[%c0_12, %c0_13] : memref<1x256xf32, #tpu.memory_space<vmem>>, vector<1x256xf32>
      %14 = vector.broadcast %13 : vector<1x256xf32> to vector<8x256xf32>
      %15 = arith.addf %12, %14 : vector<8x256xf32>
      %cst_14 = arith.constant 0.000000e+00 : f32
      %16 = vector.broadcast %cst_14 : f32 to vector<8x256xf32>
      %17 = arith.maximumf %15, %16 : vector<8x256xf32>
      %c0_15 = arith.constant 0 : index
      %c0_16 = arith.constant 0 : index
      %18 = vector.load %arg6[%c0_15, %c0_16] : memref<8x256xf32, #tpu.memory_space<vmem>>, vector<8x256xf32>
      tpu.vector_store %arg6[%c0_15, %c0_16], %17 {strides = array<i32>} : memref<8x256xf32, #tpu.memory_space<vmem>>, vector<8x256xf32>,
    } else {
    }
    return
  }
  func.func @transform_0(%arg0: i32, %arg1: i32, %arg2: i32) -> (i32, i32) {
    %c0_i32 = arith.constant 0 : i32
    return %arg0, %arg2 : i32, i32
  }
  func.func @transform_1(%arg0: i32, %arg1: i32, %arg2: i32) -> (i32, i32) {
    %c0_i32 = arith.constant 0 : i32
    return %arg2, %arg1 : i32, i32
  }
  func.func @transform_2(%arg0: i32, %arg1: i32, %arg2: i32) -> (i32, i32) {
    %c0_i32 = arith.constant 0 : i32
    %c0_i32_0 = arith.constant 0 : i32
    return %c0_i32, %arg1 : i32, i32
  }
  func.func @transform_3(%arg0: i32, %arg1: i32, %arg2: i32) -> (i32, i32) {
    %c0_i32 = arith.constant 0 : i32
    return %arg0, %arg1 : i32, i32
  }
}

</mosaic_0001>

<llo_original>
// kernel: one_layer_projection_head.1
$region0: #{one_layer_projection_head.1}
  #allocation0 [shape = 'u32[]', space=smem, size = 0x4, offset = 0x4, fixed_abs, tag = 'smem constant byte address 0x4 - core index']
  #allocation1 [shape = 'u32[144,128]{1,0:T(1,128)}', space=vmem, size = 0x12000, scoped, tag = 'internal scratch']
  #allocation2 [shape = 'f32[8,256]{1,0:T(8,128)}', space=vmem, size = 0x2000, scoped, tag = 'scratch operand']
  %s0 = inlined_call_operand.vmem [shape: f32[8,128], index: 0, kind: input, shape index: {}]
  %s1 = inlined_call_operand.vmem [shape: f32[128,256], index: 1, kind: input, shape index: {}]
  %s2 = inlined_call_operand.vmem [shape: f32[1,256], index: 2, kind: input, shape index: {}]
  %s3 = inlined_call_operand.hbm [shape: f32[8,256], index: 3, kind: output, shape index: {}]
  %s4 = sld [smem:[#allocation0]]
  $region30: #{one_layer_projection_head.1} parent=0
    _
  %s6 = ssub.s32 1, %s4
  %s7 = scalar_select 0, %s6, %s4
  $region1: #{one_layer_projection_head.1} parent=0
    #allocation3 [shape = 'u8[8192]{0}', space=vmem, size = 0x2000, scoped, tag = 'output window, operand 0, single buffered']
    #allocation4 [shape = 's32[1]{0}', space=sflag, size = 0x4, scoped, tag = 'scoped memory for one_layer_projection_head.1']
    %8 = vsyncpa [#allocation4], 0
    // Predicated region
    $region2: #{one_layer_projection_head.1} parent=1 // pred_check
      _
    $region3: #{one_layer_projection_head.1} parent=1 // pred_check_branch
      %10 = sbr.rel (0) target = $region5
    $region4: #{one_layer_projection_head.1} parent=1 // pred_region
      _
    $region5: #{one_layer_projection_head.1} parent=1 // pred_fallthru
      _
    // Predicated region
    $region6: #{one_layer_projection_head.1} parent=1 // pred_check
      _
    $region7: #{one_layer_projection_head.1} parent=1 // pred_check_branch
      %12 = sbr.rel (0) target = $region9
    $region8: #{one_layer_projection_head.1} parent=1 // pred_region
      _
    $region9: #{one_layer_projection_head.1} parent=1 // pred_fallthru
      _
    // Predicated region
    $region10: #{one_layer_projection_head.1} parent=1 // pred_check
      _
    $region11: #{one_layer_projection_head.1} parent=1 // pred_check_branch
      %14 = sbr.rel (0) target = $region13
    $region12: #{one_layer_projection_head.1} parent=1 // pred_region
      _
    $region13: #{one_layer_projection_head.1} parent=1 // pred_fallthru
      _
    %p15 = scmp.eq.s32.totalorder 0, 0
    // Predicated region
    $region14: #{one_layer_projection_head.1} parent=1 // pred_check
      %p16 = pneg %p15
    $region15: #{one_layer_projection_head.1} parent=1 // pred_check_branch
      %18 = sbr.rel (%p16) target = $region17
    $region16: #{one_layer_projection_head.1} parent=1 // pred_region
      %19 = vst [vmem:[#allocation2] sm:$0xff] 0.0
      %20 = vst [vmem:[#allocation2 + $0x8] sm:$0xff] 0.0
    $region17: #{one_layer_projection_head.1} parent=1 // pred_fallthru
      _
    %v21 = vld [vmem:[#allocation2] sm:$0xff]
    %v22 = vld [vmem:[#allocation2 + $0x8] sm:$0xff]
    %v23 = vld [vmem:[%s0] sm:$0xff]
    %v24 = vld [vmem:[%s1] sm:$0xff]
    %v25 = vld [vmem:[%s1 + $0x8] sm:$0xff]
    %v26 = vld [vmem:[%s1 + $0x10] sm:$0xff]
    %v27 = vld [vmem:[%s1 + $0x18] sm:$0xff]
    %v28 = vld [vmem:[%s1 + $0x20] sm:$0xff]
    %v29 = vld [vmem:[%s1 + $0x28] sm:$0xff]
    %v30 = vld [vmem:[%s1 + $0x30] sm:$0xff]
    %v31 = vld [vmem:[%s1 + $0x38] sm:$0xff]
    %v32 = vld [vmem:[%s1 + $0x40] sm:$0xff]
    %v33 = vld [vmem:[%s1 + $0x48] sm:$0xff]
    %v34 = vld [vmem:[%s1 + $0x50] sm:$0xff]
    %v35 = vld [vmem:[%s1 + $0x58] sm:$0xff]
    %v36 = vld [vmem:[%s1 + $0x60] sm:$0xff]
    %v37 = vld [vmem:[%s1 + $0x68] sm:$0xff]
    %v38 = vld [vmem:[%s1 + $0x70] sm:$0xff]
    %v39 = vld [vmem:[%s1 + $0x78] sm:$0xff]
    %v40 = vld [vmem:[%s1 + $0x80] sm:$0xff]
    %v41 = vld [vmem:[%s1 + $0x88] sm:$0xff]
    %v42 = vld [vmem:[%s1 + $0x90] sm:$0xff]
    %v43 = vld [vmem:[%s1 + $0x98] sm:$0xff]
    %v44 = vld [vmem:[%s1 + $0xa0] sm:$0xff]
    %v45 = vld [vmem:[%s1 + $0xa8] sm:$0xff]
    %v46 = vld [vmem:[%s1 + $0xb0] sm:$0xff]
    %v47 = vld [vmem:[%s1 + $0xb8] sm:$0xff]
    %v48 = vld [vmem:[%s1 + $0xc0] sm:$0xff]
    %v49 = vld [vmem:[%s1 + $0xc8] sm:$0xff]
    %v50 = vld [vmem:[%s1 + $0xd0] sm:$0xff]
    %v51 = vld [vmem:[%s1 + $0xd8] sm:$0xff]
    %v52 = vld [vmem:[%s1 + $0xe0] sm:$0xff]
    %v53 = vld [vmem:[%s1 + $0xe8] sm:$0xff]
    %v54 = vld [vmem:[%s1 + $0xf0] sm:$0xff]
    %v55 = vld [vmem:[%s1 + $0xf8] sm:$0xff]
    %56 = vmatprep.subr.mxu0 %v55
    %57 = vmatpush1.msra.mxu0 %v54
    %58 = vmatprep.subr.mxu0 %v53
    %59 = vmatpush1.msra.mxu0 %v52
    %60 = vmatprep.subr.mxu0 %v51
    %61 = vmatpush1.msra.mxu0 %v50
    %62 = vmatprep.subr.mxu0 %v49
    %63 = vmatpush1.msra.mxu0 %v48
    %64 = vmatprep.subr.mxu0 %v47
    %65 = vmatpush1.msra.mxu0 %v46
    %66 = vmatprep.subr.mxu0 %v45
    %67 = vmatpush1.msra.mxu0 %v44
    %68 = vmatprep.subr.mxu0 %v43
    %69 = vmatpush1.msra.mxu0 %v42
    %70 = vmatprep.subr.mxu0 %v41
    %71 = vmatpush1.msra.mxu0 %v40
    %72 = vmatprep.subr.mxu0 %v39
    %73 = vmatpush1.msra.mxu0 %v38
    %74 = vmatprep.subr.mxu0 %v37
    %75 = vmatpush1.msra.mxu0 %v36
    %76 = vmatprep.subr.mxu0 %v35
    %77 = vmatpush1.msra.mxu0 %v34
    %78 = vmatprep.subr.mxu0 %v33
    %79 = vmatpush1.msra.mxu0 %v32
    %80 = vmatprep.subr.mxu0 %v31
    %81 = vmatpush1.msra.mxu0 %v30
    %82 = vmatprep.subr.mxu0 %v29
    %83 = vmatpush1.msra.mxu0 %v28
    %84 = vmatprep.subr.mxu0 %v27
    %85 = vmatpush1.msra.mxu0 %v26
    %86 = vmatprep.subr.mxu0 %v25
    %87 = vmatpush1.msra.mxu0 %v24
    %88 = vmatprep.subr.mxu0 0.0
    %89 = vmatpush2.msra.mxu0 0.0
    %90 = vmatprep.subr.mxu0 0.0
    %91 = vmatpush2.msra.mxu0 0.0
    %92 = vmatprep.subr.mxu0 0.0
    %93 = vmatpush2.msra.mxu0 0.0
    %94 = vmatprep.subr.mxu0 0.0
    %95 = vmatpush2.msra.mxu0 0.0
    %96 = vmatprep.subr.mxu0 0.0
    %97 = vmatpush2.msra.mxu0 0.0
    %98 = vmatprep.subr.mxu0 0.0
    %99 = vmatpush2.msra.mxu0 0.0
    %100 = vmatprep.subr.mxu0 0.0
    %101 = vmatpush2.msra.mxu0 0.0
    %102 = vmatprep.subr.mxu0 0.0
    %103 = vmatpush2.msra.mxu0 0.0
    %104 = vmatprep.subr.mxu0 0.0
    %105 = vmatpush2.msra.mxu0 0.0
    %106 = vmatprep.subr.mxu0 0.0
    %107 = vmatpush2.msra.mxu0 0.0
    %108 = vmatprep.subr.mxu0 0.0
    %109 = vmatpush2.msra.mxu0 0.0
    %110 = vmatprep.subr.mxu0 0.0
    %111 = vmatpush2.msra.mxu0 0.0
    %112 = vmatprep.subr.mxu0 0.0
    %113 = vmatpush2.msra.mxu0 0.0
    %114 = vmatprep.subr.mxu0 0.0
    %115 = vmatpush2.msra.mxu0 0.0
    %116 = vmatprep.subr.mxu0 0.0
    %117 = vmatpush2.msra.mxu0 0.0
    %118 = vmatprep.subr.mxu0 0.0
    %119 = vmatpush2.msra.mxu0 0.0
    %120 = vmatprep.mubr.f32.mxu0 0.0
    %121 = vmatmul.mubr.f32.gmra.mxu0 %v23
    %v122 = vpop.f32.mrf.mxu0
    %v123 = vadd.f32 0.0, %v122
    %v124 = vpop.f32.mrf.mxu0
    %v125 = vadd.f32 0.0, %v124
    %126 = vdwg.mxu0
    %v127 = vadd.f32 %v21, %v123
    %v128 = vadd.f32 %v22, %v125
    %129 = vst [vmem:[#allocation2] sm:$0xff] %v127
    %130 = vst [vmem:[#allocation2 + $0x8] sm:$0xff] %v128
    // Predicated region
    $region18: #{one_layer_projection_head.1} parent=1 // pred_check
      %p131 = pneg %p15
    $region19: #{one_layer_projection_head.1} parent=1 // pred_check_branch
      %133 = sbr.rel (%p131) target = $region21
    $region20: #{one_layer_projection_head.1} parent=1 // pred_region
      %v134 = vld [vmem:[#allocation2] sm:$0xff]
      %v135 = vld [vmem:[#allocation2 + $0x8] sm:$0xff]
      %v136 = vld [vmem:[%s2] sm:$0x3]
      %v138 = vlaneseq
      %v139 = vshrl.u32 %v138, 7
      %v140 = vsub.s32 0, %v139
      %v141 = vrot.slane %v136, %v140
      %v142 = vlaneseq
      %v143 = vshrl.u32 %v142, 7
      %v144 = vsub.s32 1, %v143
      %v145 = vrot.slane %v136, %v144
      %v148 = vadd.f32 %v134, %v141
      %v149 = vadd.f32 %v135, %v145
      %v150 = vmax.f32 %v148, 0.0
      %v151 = vmax.f32 %v149, 0.0
      %152 = vst [vmem:[#allocation3] sm:$0xff] %v150
      %153 = vst [vmem:[#allocation3 + $0x8] sm:$0xff] %v151
    $region21: #{one_layer_projection_head.1} parent=1 // pred_fallthru
      _
    // Predicated region
    $region22: #{one_layer_projection_head.1} parent=1 // pred_check
      _
    $region23: #{one_layer_projection_head.1} parent=1 // pred_check_branch
      %155 = sbr.rel (0) target = $region25
    $region24: #{one_layer_projection_head.1} parent=1 // pred_region
      %s157 = ssub.s32 256, 256
      %158 = vsyncadd [#allocation4], %s157
      %s160 = sshll.u32 [#allocation3], 4
      %s161 = int_to_ptr.vmem [resolvable:$true] %s160
      %163 = dma.vmem_to_hbm [thread:$0]  %s161, 256, %s3, [#allocation4]
    $region25: #{one_layer_projection_head.1} parent=1 // pred_fallthru
      _
    // Predicated region
    $region26: #{one_layer_projection_head.1} parent=1 // pred_check
      _
    $region27: #{one_layer_projection_head.1} parent=1 // pred_check_branch
      %165 = sbr.rel (0) target = $region29
    $region28: #{one_layer_projection_head.1} parent=1 // pred_region
      %166 = dma.done [#allocation4], 256
    $region29: #{one_layer_projection_head.1} parent=1 // pred_fallthru
      _
    %167 = vsyncpa [#allocation4], 1

</llo_original>
